<compile_context>
chip_gen: v5e
topology: v5e:2x2
jax: 0.10.0
libtpu: 0.0.40
codegen_flags: <defaults>
</compile_context>

<pallas_src>
import functools

import jax
import jax.numpy as jnp
from jax.experimental import pallas as pl
from jax.experimental.pallas import tpu as pltpu

NEG_SLOPE = 0.01   # PyTorch LeakyReLU default negative_slope
BN_EPS = 1e-5      # PyTorch BatchNorm2d default eps


def _round_up(x, m):
    return ((x + m - 1) // m) * m


# --------------------------------------------------------------------------- #
# Kernel                                                                       #
# --------------------------------------------------------------------------- #
def _double_conv_kernel(x_ref, w1_ref, w2_ref, st_ref, o_ref,
                        lhs1_ref, lhs2_ref, *, H, neg_slope):
    """One block of Nb images (rows = Nb*H lane-dense rows), fully fused.

    x_ref:    (rows, tap1)        compute dtype, lane-padded (w, cin) rows
    w1_ref:   (3*tap1, tap2)      banded conv1 weight (zero rows/cols in pads)
    w2_ref:   (3*tap2, WCout)     banded conv2 weight
    st_ref:   (4, tap2) f32       rows: [s1, t1, s2, t2] folded bias+BN
    o_ref:    (rows, WCout)       output rows
    lhs1_ref: (rows, 3*tap1)      VMEM scratch: conv1 LHS (3 height taps)
    lhs2_ref: (rows, 3*tap2)      VMEM scratch: conv2 LHS
    """
    rows, tap1 = x_ref.shape
    tap2 = w1_ref.shape[1]
    wcout = o_ref.shape[1]
    nb = rows // H
    cdt = w1_ref.dtype

    # ---- conv1 LHS: three tap stores straight into the VMEM scratch ----
    xv = x_ref[...]                                       # already compute dtype
    lhs1_ref[:, tap1:2 * tap1] = xv                       # center tap
    lhs1_ref[1:rows, 0:tap1] = xv[0:rows - 1]             # top tap: row h <- x[h-1]
    lhs1_ref[0:rows - 1, 2 * tap1:3 * tap1] = xv[1:rows]  # bottom tap: row h <- x[h+1]
    z1 = jnp.zeros((1, tap1), cdt)
    for i in range(nb):                                   # 'same' height-pad borders
        lhs1_ref[i * H:i * H + 1, 0:tap1] = z1                          # top of image i
        lhs1_ref[(i + 1) * H - 1:(i + 1) * H, 2 * tap1:3 * tap1] = z1   # bottom of image i

    y = jnp.dot(lhs1_ref[...], w1_ref[...],
                preferred_element_type=jnp.float32)       # (rows, tap2) f32
    # Dropout2d(0.1): identity in eval mode.  Conv1 bias + BN1 folded in st[0]/st[1].
    y = y * st_ref[0:1, :] + st_ref[1:2, :]
    yc = y.astype(cdt)                                    # cast once, before tap dup

    # ---- conv2 LHS ----
    lhs2_ref[:, tap2:2 * tap2] = yc
    lhs2_ref[1:rows, 0:tap2] = yc[0:rows - 1]
    lhs2_ref[0:rows - 1, 2 * tap2:3 * tap2] = yc[1:rows]
    z2 = jnp.zeros((1, tap2), cdt)
    for i in range(nb):
        lhs2_ref[i * H:i * H + 1, 0:tap2] = z2
        lhs2_ref[(i + 1) * H - 1:(i + 1) * H, 2 * tap2:3 * tap2] = z2

    z = jnp.dot(lhs2_ref[...], w2_ref[...],
                preferred_element_type=jnp.float32)       # (rows, WCout) f32
    z = z * st_ref[2:3, 0:wcout] + st_ref[3:4, 0:wcout]   # conv2 bias + BN2
    z = jnp.where(z > 0, z, neg_slope * z)                # LeakyReLU
    o_ref[...] = z.astype(o_ref.dtype)


# --------------------------------------------------------------------------- #
# Host-side weight / BN preprocessing                                          #
# --------------------------------------------------------------------------- #
def _band_weights(w_oihw, W, tap_in, tap_out):
    """(Co, Ci, 3, 3) -> (3*tap_in, tap_out) block-banded matrix B such that
       conv3x3_same(x) == [top|center|bottom tap rows of x2d] @ B,
       x2d = (H, W*Ci) lane-dense rows; pads (tap_in-W*Ci / tap_out-W*Co) are zero."""
    Co, Ci, KH, KW = w_oihw.shape
    k = jnp.transpose(w_oihw, (2, 3, 1, 0))            # (ky, kx, ci, co)
    w_in = jnp.arange(W)[:, None]
    w_out = jnp.arange(W)[None, :]
    kx = w_in - w_out + 1                              # (W, W)
    valid = (kx >= 0) & (kx < KW)
    b = k[:, jnp.clip(kx, 0, KW - 1), :, :]            # (ky, w_in, w_out, ci, co)
    b = jnp.where(valid[None, :, :, None, None], b, 0.0)
    b = jnp.transpose(b, (0, 1, 3, 2, 4))              # (ky, w_in, ci, w_out, co)
    b = b.reshape(KH, W * Ci, W * Co)
    b = jnp.pad(b, ((0, 0), (0, tap_in - W * Ci), (0, tap_out - W * Co)))
    return b.reshape(KH * tap_in, tap_out)


def _fold_bn_bias(bn, bias, W, tap):
    """Fold conv bias + BatchNorm (eval) into one scale/shift over (w, co) lanes."""
    scale = bn["gamma"] / jnp.sqrt(bn["var"] + BN_EPS)                # (Co,)
    shift = bn["beta"] - bn["mean"] * scale + bias * scale            # bias folded in
    s = jnp.tile(scale, W)
    t = jnp.tile(shift, W)
    pad = tap - s.shape[0]
    return (jnp.pad(s, (0, pad)).astype(jnp.float32),
            jnp.pad(t, (0, pad)).astype(jnp.float32))                 # (tap,)


def _pick_nb(N, H, target_rows):
    """Images per grid step: fill the MXU M dim (~target_rows rows) while keeping
    >=2 grid blocks when N >= 2 so v7x's two TensorCores both get work."""
    best = 1
    for nb in range(1, N + 1):
        if N % nb != 0:
            continue
        if nb * H > target_rows:
            break
        if N >= 2 and N // nb < 2:
            break
        best = nb
    return best


# --------------------------------------------------------------------------- #
# Wrapper                                                                      #
# --------------------------------------------------------------------------- #
def double_conv_block(x_nchw, params, *, compute_dtype=jnp.bfloat16,
                      out_dtype=None, target_rows=256):
    """Forward pass of DoubleConvBlock (batch_norm=True, eval mode). NCHW in/out.

    compute_dtype: MXU operand / tap-scratch dtype (bf16 default on all chips;
      accumulation and the BN/LeakyReLU epilogue stay in f32, so bf16 costs ~1%
      relative error).  out_dtype defaults to the input dtype; pass jnp.bfloat16
      to halve the output HBM stream when the consumer allows it.
    """
    N, Cin, H, W = x_nchw.shape
    Cout = params["w1"].shape[0]
    WCin, WCout = W * Cin, W * Cout
    tap1 = _round_up(WCin, 128)    # lane-pad each tap slot to a vreg multiple
    tap2 = _round_up(WCout, 128)
    if out_dtype is None:
        out_dtype = x_nchw.dtype

    nb = _pick_nb(N, H, target_rows)
    rows = nb * H                                      # matmul M per grid step
    assert (N * H) % rows == 0
    assert rows % 8 == 0 or rows == N * H, "Nb*H must be sublane-tileable"

    # NCHW -> lane-dense rows (N*H, W*Cin), lane-padded and cast ONCE to the
    # compute dtype (bf16 input DMA).  Pure layout work, done once in XLA.
    x2d = jnp.transpose(x_nchw, (0, 2, 3, 1)).reshape(N * H, WCin)
    if tap1 > WCin:
        x2d = jnp.pad(x2d, ((0, 0), (0, tap1 - WCin)))
    x2d = x2d.astype(compute_dtype)

    w1b = _band_weights(params["w1"], W, tap1, tap2).astype(compute_dtype)
    w2b = _band_weights(params["w2"], W, tap2, WCout).astype(compute_dtype)
    s1, t1 = _fold_bn_bias(params["bn1"], params["b1"], W, tap2)
    s2, t2 = _fold_bn_bias(params["bn2"], params["b2"], W, tap2)
    st = jnp.stack([s1, t1, s2, t2], axis=0)           # (4, tap2) f32

    kern = functools.partial(_double_conv_kernel, H=H, neg_slope=NEG_SLOPE)
    grid = ((N * H) // rows,)
    out2d = pl.pallas_call(
        kern,
        out_shape=jax.ShapeDtypeStruct((N * H, WCout), out_dtype),
        grid=grid,
        in_specs=[
            pl.BlockSpec((rows, tap1), lambda n: (n, 0)),
            pl.BlockSpec((3 * tap1, tap2), lambda n: (0, 0)),
            pl.BlockSpec((3 * tap2, WCout), lambda n: (0, 0)),
            pl.BlockSpec((4, tap2), lambda n: (0, 0)),
        ],
        out_specs=pl.BlockSpec((rows, WCout), lambda n: (n, 0)),
        scratch_shapes=[
            pltpu.VMEM((rows, 3 * tap1), compute_dtype),   # conv1 LHS taps
            pltpu.VMEM((rows, 3 * tap2), compute_dtype),   # conv2 LHS taps
        ],
        compiler_params=pltpu.CompilerParams(
            dimension_semantics=("parallel",)),
    )(x2d, w1b, w2b, st)

    # Lane-dense output rows -> NCHW (free reshape + the transpose we'd do anyway).
    out = out2d.reshape(N, H, W, Cout)
    return jnp.transpose(out, (0, 3, 1, 2))


# --------------------------------------------------------------------------- #
# Parameters + pure-JAX reference                                              #
# --------------------------------------------------------------------------- #
def init_params(key, in_ch, out_ch):
    ks = jax.random.split(key, 12)

    def bn(k1, k2, k3, k4, c):
        return dict(
            gamma=1.0 + 0.1 * jax.random.normal(k1, (c,), jnp.float32),
            beta=0.1 * jax.random.normal(k2, (c,), jnp.float32),
            mean=0.1 * jax.random.normal(k3, (c,), jnp.float32),
            var=1.0 + 0.1 * jnp.abs(jax.random.normal(k4, (c,), jnp.float32)))

    w1 = jax.random.normal(ks[0], (out_ch, in_ch, 3, 3), jnp.float32) * 0.1
    b1 = jax.random.normal(ks[1], (out_ch,), jnp.float32) * 0.1
    w2 = jax.random.normal(ks[2], (out_ch, out_ch, 3, 3), jnp.float32) * 0.1
    b2 = jax.random.normal(ks[3], (out_ch,), jnp.float32) * 0.1
    return dict(w1=w1, b1=b1, bn1=bn(*ks[4:8], out_ch),
                w2=w2, b2=b2, bn2=bn(*ks[8:12], out_ch))


def _reference(x_nchw, params):
    def conv(x, w, b):
        y = jax.lax.conv_general_dilated(
            x, w, window_strides=(1, 1), padding="SAME",
            dimension_numbers=("NCHW", "OIHW", "NCHW"))
        return y + b[None, :, None, None]

    def bn(x, p):
        scale = p["gamma"] / jnp.sqrt(p["var"] + BN_EPS)
        shift = p["beta"] - p["mean"] * scale
        return x * scale[None, :, None, None] + shift[None, :, None, None]

    y = conv(x_nchw, params["w1"], params["b1"])
    y = bn(y, params["bn1"])
    y = conv(y, params["w2"], params["b2"])
    y = bn(y, params["bn2"])
    return jnp.where(y > 0, y, NEG_SLOPE * y)


if __name__ == "__main__":
    key = jax.random.PRNGKey(0)
    kx, kp = jax.random.split(key)

    N, IN_CH, OUT_CH, H, W = 2, 4, 8, 16, 16
    x = jax.random.normal(kx, (N, IN_CH, H, W), jnp.float32)
    params = init_params(kp, IN_CH, OUT_CH)

    ref = _reference(x, params)

    # f32 path: strict correctness check of the fused banded-conv kernel.
    out_f32 = jax.block_until_ready(
        double_conv_block(x, params, compute_dtype=jnp.float32))
    assert out_f32.shape == (N, OUT_CH, H, W)
    assert jnp.allclose(out_f32, ref, atol=1e-4, rtol=1e-4), \
        "f32 mismatch vs XLA reference"

    # Default (bf16 operands + bf16 input stream, f32 acc/epilogue) fast path.
    out_bf16 = jax.block_until_ready(double_conv_block(x, params))
    assert jnp.allclose(out_bf16, ref, atol=1e-1, rtol=1e-1), \
        "bf16 mismatch vs reference"

    print("KERNEL_OK")
</pallas_src>

<mosaic_0001>
module attributes {stable_mosaic.version = 11 : i64} {
  func.func @_double_conv_kernel(%arg0: i32, %arg1: memref<16x128xf32, #tpu.memory_space<vmem>>, %arg2: memref<384x128xf32, #tpu.memory_space<vmem>>, %arg3: memref<384x128xf32, #tpu.memory_space<vmem>>, %arg4: memref<4x128xf32, #tpu.memory_space<vmem>>, %arg5: memref<16x128xf32, #tpu.memory_space<vmem>>, %arg6: memref<16x384xf32, #tpu.memory_space<vmem>>, %arg7: memref<16x384xf32, #tpu.memory_space<vmem>>) attributes {dimension_semantics = [#tpu.dimension_semantics<parallel>], iteration_bounds = array<i64: 2>, scalar_prefetch = 0 : i64, scratch_operands = 2 : i64, tpu.core_type = #tpu.core_type<tc>, window_params = [{transform_indices = @transform_0, window_bounds = array<i64: 16, 128>}, {pipeline_mode = #tpu.pipeline_mode<synchronous>, transform_indices = @transform_1, window_bounds = array<i64: 384, 128>}, {pipeline_mode = #tpu.pipeline_mode<synchronous>, transform_indices = @transform_2, window_bounds = array<i64: 384, 128>}, {pipeline_mode = #tpu.pipeline_mode<synchronous>, transform_indices = @transform_3, window_bounds = array<i64: 4, 128>}, {transform_indices = @transform_4, window_bounds = array<i64: 16, 128>}]} {
    %c0 = arith.constant 0 : index
    %c0_0 = arith.constant 0 : index
    %0 = vector.load %arg1[%c0, %c0_0] : memref<16x128xf32, #tpu.memory_space<vmem>>, vector<16x128xf32>
    %c0_1 = arith.constant 0 : index
    %c128 = arith.constant 128 : index
    %1 = vector.load %arg6[%c0_1, %c128] : memref<16x384xf32, #tpu.memory_space<vmem>>, vector<16x128xf32>
    tpu.vector_store %arg6[%c0_1, %c128], %0 {strides = array<i32>} : memref<16x384xf32, #tpu.memory_space<vmem>>, vector<16x128xf32>,
    %2 = vector.extract_strided_slice %0 {offsets = [0, 0], sizes = [15, 128], strides = [1, 1]} : vector<16x128xf32> to vector<15x128xf32>
    %c1 = arith.constant 1 : index
    %c0_2 = arith.constant 0 : index
    %3 = vector.load %arg6[%c1, %c0_2] : memref<16x384xf32, #tpu.memory_space<vmem>>, vector<15x128xf32>
    tpu.vector_store %arg6[%c1, %c0_2], %2 {strides = array<i32>} : memref<16x384xf32, #tpu.memory_space<vmem>>, vector<15x128xf32>,
    %4 = vector.extract_strided_slice %0 {offsets = [1, 0], sizes = [15, 128], strides = [1, 1]} : vector<16x128xf32> to vector<15x128xf32>
    %c0_3 = arith.constant 0 : index
    %c256 = arith.constant 256 : index
    %5 = vector.load %arg6[%c0_3, %c256] : memref<16x384xf32, #tpu.memory_space<vmem>>, vector<15x128xf32>
    tpu.vector_store %arg6[%c0_3, %c256], %4 {strides = array<i32>} : memref<16x384xf32, #tpu.memory_space<vmem>>, vector<15x128xf32>,
    %cst = arith.constant 0.000000e+00 : f32
    %6 = vector.broadcast %cst : f32 to vector<1x128xf32>
    %c0_4 = arith.constant 0 : index
    %c0_5 = arith.constant 0 : index
    %7 = vector.load %arg6[%c0_4, %c0_5] : memref<16x384xf32, #tpu.memory_space<vmem>>, vector<1x128xf32>
    tpu.vector_store %arg6[%c0_4, %c0_5], %6 {strides = array<i32>} : memref<16x384xf32, #tpu.memory_space<vmem>>, vector<1x128xf32>,
    %c15 = arith.constant 15 : index
    %c256_6 = arith.constant 256 : index
    %8 = vector.load %arg6[%c15, %c256_6] : memref<16x384xf32, #tpu.memory_space<vmem>>, vector<1x128xf32>
    tpu.vector_store %arg6[%c15, %c256_6], %6 {strides = array<i32>} : memref<16x384xf32, #tpu.memory_space<vmem>>, vector<1x128xf32>,
    %c0_7 = arith.constant 0 : index
    %c0_8 = arith.constant 0 : index
    %9 = vector.load %arg6[%c0_7, %c0_8] : memref<16x384xf32, #tpu.memory_space<vmem>>, vector<16x384xf32>
    %c0_9 = arith.constant 0 : index
    %c0_10 = arith.constant 0 : index
    %10 = vector.load %arg2[%c0_9, %c0_10] : memref<384x128xf32, #tpu.memory_space<vmem>>, vector<384x128xf32>
    %cst_11 = arith.constant dense<0.000000e+00> : vector<16x128xf32>
    %11 = tpu.matmul %9, %10, %cst_11 {dimension_numbers = #tpu.dot_dimension_numbers<[1], [0], [0], [1], [0, 0, 1, 1], [], []>} : vector<16x384xf32>, vector<384x128xf32>, vector<16x128xf32> -> vector<16x128xf32>
    %c0_12 = arith.constant 0 : index
    %c0_13 = arith.constant 0 : index
    %12 = vector.load %arg4[%c0_12, %c0_13] : memref<4x128xf32, #tpu.memory_space<vmem>>, vector<1x128xf32>
    %13 = vector.broadcast %12 : vector<1x128xf32> to vector<16x128xf32>
    %14 = arith.mulf %11, %13 : vector<16x128xf32>
    %c1_14 = arith.constant 1 : index
    %c0_15 = arith.constant 0 : index
    %15 = vector.load %arg4[%c1_14, %c0_15] : memref<4x128xf32, #tpu.memory_space<vmem>>, vector<1x128xf32>
    %16 = vector.broadcast %15 : vector<1x128xf32> to vector<16x128xf32>
    %17 = arith.addf %14, %16 : vector<16x128xf32>
    %c0_16 = arith.constant 0 : index
    %c128_17 = arith.constant 128 : index
    %18 = vector.load %arg7[%c0_16, %c128_17] : memref<16x384xf32, #tpu.memory_space<vmem>>, vector<16x128xf32>
    tpu.vector_store %arg7[%c0_16, %c128_17], %17 {strides = array<i32>} : memref<16x384xf32, #tpu.memory_space<vmem>>, vector<16x128xf32>,
    %19 = vector.extract_strided_slice %17 {offsets = [0, 0], sizes = [15, 128], strides = [1, 1]} : vector<16x128xf32> to vector<15x128xf32>
    %c1_18 = arith.constant 1 : index
    %c0_19 = arith.constant 0 : index
    %20 = vector.load %arg7[%c1_18, %c0_19] : memref<16x384xf32, #tpu.memory_space<vmem>>, vector<15x128xf32>
    tpu.vector_store %arg7[%c1_18, %c0_19], %19 {strides = array<i32>} : memref<16x384xf32, #tpu.memory_space<vmem>>, vector<15x128xf32>,
    %21 = vector.extract_strided_slice %17 {offsets = [1, 0], sizes = [15, 128], strides = [1, 1]} : vector<16x128xf32> to vector<15x128xf32>
    %c0_20 = arith.constant 0 : index
    %c256_21 = arith.constant 256 : index
    %22 = vector.load %arg7[%c0_20, %c256_21] : memref<16x384xf32, #tpu.memory_space<vmem>>, vector<15x128xf32>
    tpu.vector_store %arg7[%c0_20, %c256_21], %21 {strides = array<i32>} : memref<16x384xf32, #tpu.memory_space<vmem>>, vector<15x128xf32>,
    %cst_22 = arith.constant 0.000000e+00 : f32
    %23 = vector.broadcast %cst_22 : f32 to vector<1x128xf32>
    %c0_23 = arith.constant 0 : index
    %c0_24 = arith.constant 0 : index
    %24 = vector.load %arg7[%c0_23, %c0_24] : memref<16x384xf32, #tpu.memory_space<vmem>>, vector<1x128xf32>
    tpu.vector_store %arg7[%c0_23, %c0_24], %23 {strides = array<i32>} : memref<16x384xf32, #tpu.memory_space<vmem>>, vector<1x128xf32>,
    %c15_25 = arith.constant 15 : index
    %c256_26 = arith.constant 256 : index
    %25 = vector.load %arg7[%c15_25, %c256_26] : memref<16x384xf32, #tpu.memory_space<vmem>>, vector<1x128xf32>
    tpu.vector_store %arg7[%c15_25, %c256_26], %23 {strides = array<i32>} : memref<16x384xf32, #tpu.memory_space<vmem>>, vector<1x128xf32>,
    %c0_27 = arith.constant 0 : index
    %c0_28 = arith.constant 0 : index
    %26 = vector.load %arg7[%c0_27, %c0_28] : memref<16x384xf32, #tpu.memory_space<vmem>>, vector<16x384xf32>
    %c0_29 = arith.constant 0 : index
    %c0_30 = arith.constant 0 : index
    %27 = vector.load %arg3[%c0_29, %c0_30] : memref<384x128xf32, #tpu.memory_space<vmem>>, vector<384x128xf32>
    %cst_31 = arith.constant dense<0.000000e+00> : vector<16x128xf32>
    %28 = tpu.matmul %26, %27, %cst_31 {dimension_numbers = #tpu.dot_dimension_numbers<[1], [0], [0], [1], [0, 0, 1, 1], [], []>} : vector<16x384xf32>, vector<384x128xf32>, vector<16x128xf32> -> vector<16x128xf32>
    %c2 = arith.constant 2 : index
    %c0_32 = arith.constant 0 : index
    %29 = vector.load %arg4[%c2, %c0_32] : memref<4x128xf32, #tpu.memory_space<vmem>>, vector<1x128xf32>
    %30 = vector.broadcast %29 : vector<1x128xf32> to vector<16x128xf32>
    %31 = arith.mulf %28, %30 : vector<16x128xf32>
    %c3 = arith.constant 3 : index
    %c0_33 = arith.constant 0 : index
    %32 = vector.load %arg4[%c3, %c0_33] : memref<4x128xf32, #tpu.memory_space<vmem>>, vector<1x128xf32>
    %33 = vector.broadcast %32 : vector<1x128xf32> to vector<16x128xf32>
    %34 = arith.addf %31, %33 : vector<16x128xf32>
    %cst_34 = arith.constant 0.000000e+00 : f32
    %35 = vector.broadcast %cst_34 : f32 to vector<16x128xf32>
    %36 = arith.cmpf ogt, %34, %35 : vector<16x128xf32>
    %cst_35 = arith.constant 0.00999999977 : f32
    %37 = vector.broadcast %cst_35 : f32 to vector<16x128xf32>
    %38 = arith.mulf %37, %34 : vector<16x128xf32>
    %39 = arith.select %36, %34, %38 : vector<16x128xi1>, vector<16x128xf32>
    %c0_36 = arith.constant 0 : index
    %c0_37 = arith.constant 0 : index
    %40 = vector.load %arg5[%c0_36, %c0_37] : memref<16x128xf32, #tpu.memory_space<vmem>>, vector<16x128xf32>
    tpu.vector_store %arg5[%c0_36, %c0_37], %39 {strides = array<i32>} : memref<16x128xf32, #tpu.memory_space<vmem>>, vector<16x128xf32>,
    return
  }
  func.func @transform_0(%arg0: i32) -> (i32, i32) {
    %c0_i32 = arith.constant 0 : i32
    %c0_i32_0 = arith.constant 0 : i32
    return %arg0, %c0_i32 : i32, i32
  }
  func.func @transform_1(%arg0: i32) -> (i32, i32) {
    %c0_i32 = arith.constant 0 : i32
    %c0_i32_0 = arith.constant 0 : i32
    %c0_i32_1 = arith.constant 0 : i32
    return %c0_i32, %c0_i32_0 : i32, i32
  }
  func.func @transform_2(%arg0: i32) -> (i32, i32) {
    %c0_i32 = arith.constant 0 : i32
    %c0_i32_0 = arith.constant 0 : i32
    %c0_i32_1 = arith.constant 0 : i32
    return %c0_i32, %c0_i32_0 : i32, i32
  }
  func.func @transform_3(%arg0: i32) -> (i32, i32) {
    %c0_i32 = arith.constant 0 : i32
    %c0_i32_0 = arith.constant 0 : i32
    %c0_i32_1 = arith.constant 0 : i32
    return %c0_i32, %c0_i32_0 : i32, i32
  }
  func.func @transform_4(%arg0: i32) -> (i32, i32) {
    %c0_i32 = arith.constant 0 : i32
    %c0_i32_0 = arith.constant 0 : i32
    return %arg0, %c0_i32 : i32, i32
  }
}

</mosaic_0001>

<llo_original>
// kernel: tpu_custom_call.1
$region0: #{tpu_custom_call.1}
  #allocation0 [shape = 'u32[]', space=smem, size = 0x4, offset = 0x4, fixed_abs, tag = 'smem constant byte address 0x4 - core index']
  #allocation1 [shape = 'u32[72,128]{1,0:T(1,128)}', space=vmem, size = 0x9000, scoped, tag = 'internal scratch']
  #allocation2 [shape = 'f32[16,384]{1,0:T(8,128)}', space=vmem, size = 0x6000, scoped, tag = 'scratch operand']
  #allocation3 [shape = 'f32[16,384]{1,0:T(8,128)}', space=vmem, size = 0x6000, scoped, tag = 'scratch operand']
  %s0 = inlined_call_operand.hbm [shape: f32[32,128], index: 0, kind: input, shape index: {}]
  %s1 = inlined_call_operand.hbm [shape: f32[384,128], index: 1, kind: input, shape index: {}]
  %s2 = inlined_call_operand.hbm [shape: f32[384,128], index: 2, kind: input, shape index: {}]
  %s3 = inlined_call_operand.hbm [shape: f32[4,128], index: 3, kind: input, shape index: {}]
  %s4 = inlined_call_operand.hbm [shape: f32[32,128], index: 4, kind: output, shape index: {}]
  %s5 = sld [smem:[#allocation0]]
  $region65: #{tpu_custom_call.1} parent=0
    _
  %s7 = ssub.s32 1, %s5
  %s8 = scalar_select 0, %s7, %s5
  $region1: #{tpu_custom_call.1} parent=0
    #allocation4 [shape = 'u8[16384]{0}', space=vmem, size = 0x4000, scoped, tag = 'input window, operand 0']
    #allocation5 [shape = 's32[2]{0}', space=sflag, size = 0x8, scoped, tag = 'scoped memory for tpu_custom_call.1']
    #allocation6 [shape = 's32[2]{0}', space=sflag, size = 0x8, scoped, tag = 'scoped memory for tpu_custom_call.1']
    #allocation7 [shape = 'u8[196608]{0}', space=vmem, size = 0x30000, scoped, tag = 'input window, operand 1, single buffered']
    #allocation8 [shape = 's32[1]{0}', space=sflag, size = 0x4, scoped, tag = 'scoped memory for tpu_custom_call.1']
    #allocation9 [shape = 'u8[196608]{0}', space=vmem, size = 0x30000, scoped, tag = 'input window, operand 2, single buffered']
    #allocation10 [shape = 'u8[2048]{0}', space=vmem, size = 0x800, scoped, tag = 'input window, operand 3, single buffered']
    #allocation11 [shape = 's32[1]{0}', space=sflag, size = 0x4, scoped, tag = 'scoped memory for tpu_custom_call.1']
    #allocation12 [shape = 'u8[16384]{0}', space=vmem, size = 0x4000, scoped, tag = 'output window, operand 0']
    %9 = vsyncpa [#allocation5], 0
    %s10 = scalar_lea.sflag [#allocation5], 1
    %11 = vsyncpa %s10, 0
    %12 = vsyncpa [#allocation8], 0
    %13 = vsyncpa [#allocation11], 0
    %14 = vsyncpa [#allocation6], 0
    %s15 = scalar_lea.sflag [#allocation6], 1
    %16 = vsyncpa %s15, 0
    loop: start=0, step=1, limit=4
    $region2: #{tpu_custom_call.1} parent=1 // loop_pre_header
      _
    $region3: #{tpu_custom_call.1} parent=1 // loop_header
      %s18 = sphi 0, %s22
      %p19 = scmp.ge.s32.totalorder %s18, 4
      %s28 = sphi 0, %s30
      %s31 = sphi 0, %s28
      %s32 = sphi 0, %s31
      %s48 = sphi 0, %s32
      %s52 = sphi 0, %s52
      %s54 = sphi 0, %s52
      %s55 = sphi 0, %s54
      %s69 = sphi 0, %s55
      %s73 = sphi 0, %s73
      %s75 = sphi 0, %s73
      %s76 = sphi 0, %s75
      %s90 = sphi 0, %s76
      %s94 = sphi 0, %s94
      %s96 = sphi 0, %s94
      %s97 = sphi 0, %s96
      %s111 = sphi 0, %s97
      %s117 = sphi 0, %s119
      %s120 = sphi 0, %s117
      %s121 = sphi 0, %s120
      %s137 = sphi 0, %s121
    $region4: #{tpu_custom_call.1} parent=1 // loop_header_branch
      %21 = sbr.rel (%p19) target = $region8
    $region5: #{tpu_custom_call.1} parent=1 // loop_body
      %s23 = ssub.s32 %s18, 1
      %s24 = ssub.s32 %s18, 2
      %s25 = sadd.s32 %s18, 1
      %s26 = ssub.s32 %s18, %s25
      %p27 = scmp.eq.s32.totalorder %s26, 0
      %s29 = sadd.s32 %s28, 1
      %s30 = scalar_select %p27, %s28, %s29
      %p33 = pneg %p27
      %p34 = scmp.eq.s32.totalorder %s18, 1
      %p35 = por %p33, %p34
      %p36 = scmp.ne.s32.totalorder %s28, %s31
      %p37 = scmp.eq.s32.totalorder %s18, 0
      %p38 = por %p36, %p37
      %p39 = scmp.ne.s32.totalorder %s28, %s31
      %p40 = scmp.eq.s32.totalorder %s23, 1
      %p41 = por %p39, %p40
      %p42 = scmp.ne.s32.totalorder %s31, %s32
      %p43 = scmp.eq.s32.totalorder %s23, 0
      %p44 = por %p42, %p43
      %p45 = scmp.ne.s32.totalorder %s31, %s32
      %p46 = scmp.eq.s32.totalorder %s24, 1
      %p47 = por %p45, %p46
      %p49 = scmp.ne.s32.totalorder %s32, %s48
      %p50 = scmp.eq.s32.totalorder %s24, 0
      %p51 = por %p49, %p50
      %s53 = sadd.s32 %s52, 1
      %p56 = scmp.eq.s32.totalorder %s18, 1
      %p57 = scmp.ne.s32.totalorder %s52, %s54
      %p58 = scmp.eq.s32.totalorder %s18, 0
      %p59 = por %p57, %p58
      %p60 = scmp.ne.s32.totalorder %s52, %s54
      %p61 = scmp.eq.s32.totalorder %s23, 1
      %p62 = por %p60, %p61
      %p63 = scmp.ne.s32.totalorder %s54, %s55
      %p64 = scmp.eq.s32.totalorder %s23, 0
      %p65 = por %p63, %p64
      %p66 = scmp.ne.s32.totalorder %s54, %s55
      %p67 = scmp.eq.s32.totalorder %s24, 1
      %p68 = por %p66, %p67
      %p70 = scmp.ne.s32.totalorder %s55, %s69
      %p71 = scmp.eq.s32.totalorder %s24, 0
      %p72 = por %p70, %p71
      %s74 = sadd.s32 %s73, 1
      %p77 = scmp.eq.s32.totalorder %s18, 1
      %p78 = scmp.ne.s32.totalorder %s73, %s75
      %p79 = scmp.eq.s32.totalorder %s18, 0
      %p80 = por %p78, %p79
      %p81 = scmp.ne.s32.totalorder %s73, %s75
      %p82 = scmp.eq.s32.totalorder %s23, 1
      %p83 = por %p81, %p82
      %p84 = scmp.ne.s32.totalorder %s75, %s76
      %p85 = scmp.eq.s32.totalorder %s23, 0
      %p86 = por %p84, %p85
      %p87 = scmp.ne.s32.totalorder %s75, %s76
      %p88 = scmp.eq.s32.totalorder %s24, 1
      %p89 = por %p87, %p88
      %p91 = scmp.ne.s32.totalorder %s76, %s90
      %p92 = scmp.eq.s32.totalorder %s24, 0
      %p93 = por %p91, %p92
      %s95 = sadd.s32 %s94, 1
      %p98 = scmp.eq.s32.totalorder %s18, 1
      %p99 = scmp.ne.s32.totalorder %s94, %s96
      %p100 = scmp.eq.s32.totalorder %s18, 0
      %p101 = por %p99, %p100
      %p102 = scmp.ne.s32.totalorder %s94, %s96
      %p103 = scmp.eq.s32.totalorder %s23, 1
      %p104 = por %p102, %p103
      %p105 = scmp.ne.s32.totalorder %s96, %s97
      %p106 = scmp.eq.s32.totalorder %s23, 0
      %p107 = por %p105, %p106
      %p108 = scmp.ne.s32.totalorder %s96, %s97
      %p109 = scmp.eq.s32.totalorder %s24, 1
      %p110 = por %p108, %p109
      %p112 = scmp.ne.s32.totalorder %s97, %s111
      %p113 = scmp.eq.s32.totalorder %s24, 0
      %p114 = por %p112, %p113
      %s115 = ssub.s32 %s18, %s25
      %p116 = scmp.eq.s32.totalorder %s115, 0
      %s118 = sadd.s32 %s117, 1
      %s119 = scalar_select %p116, %s117, %s118
      %p122 = pneg %p116
      %p123 = scmp.eq.s32.totalorder %s18, 1
      %p124 = por %p122, %p123
      %p125 = scmp.ne.s32.totalorder %s117, %s120
      %p126 = scmp.eq.s32.totalorder %s18, 0
      %p127 = por %p125, %p126
      %p128 = scmp.ne.s32.totalorder %s117, %s120
      %p129 = scmp.eq.s32.totalorder %s23, 1
      %p130 = por %p128, %p129
      %p131 = scmp.ne.s32.totalorder %s120, %s121
      %p132 = scmp.eq.s32.totalorder %s23, 0
      %p133 = por %p131, %p132
      %p134 = scmp.ne.s32.totalorder %s120, %s121
      %p135 = scmp.eq.s32.totalorder %s24, 1
      %p136 = por %p134, %p135
      %p138 = scmp.ne.s32.totalorder %s121, %s137
      %p139 = scmp.eq.s32.totalorder %s24, 0
      %p140 = por %p138, %p139
      %p141 = scmp.le.s32.totalorder 1, %s18
      %p142 = scmp.lt.s32.totalorder %s18, 3
      %p143 = pnand %p141, %p142
      %p144 = pneg %p143
      // Predicated region
      $region9: #{tpu_custom_call.1} parent=5 // pred_check
        _
      $region10: #{tpu_custom_call.1} parent=5 // pred_check_branch
        %146 = sbr.rel (%p143) target = $region12
      $region11: #{tpu_custom_call.1} parent=5 // pred_region
        %s147 = ssub.s32 %s18, 1
        // Predicated region
        $region13: #{tpu_custom_call.1} parent=11 // pred_check
          %p148 = pneg %p65
        $region14: #{tpu_custom_call.1} parent=11 // pred_check_branch
          %150 = sbr.rel (%p148) target = $region16
        $region15: #{tpu_custom_call.1} parent=11 // pred_region
          %152 = vsyncadd [#allocation8], 0
          %s153 = sshll.u32 %s1, 4
          %s154 = int_to_ptr.hbm [resolvable:$true] %s153
          %s155 = sshll.u32 [#allocation7], 4
          %s156 = int_to_ptr.vmem [resolvable:$true] %s155
          %161 = dma.hbm_to_vmem [thread:$0]  %s154, 6144, %s156, [#allocation8], 128, 128, 8
        $region16: #{tpu_custom_call.1} parent=11 // pred_fallthru
          _
        // Predicated region
        $region17: #{tpu_custom_call.1} parent=11 // pred_check
          %p162 = pneg %p86
        $region18: #{tpu_custom_call.1} parent=11 // pred_check_branch
          %164 = sbr.rel (%p162) target = $region20
        $region19: #{tpu_custom_call.1} parent=11 // pred_region
          %166 = vsyncadd [#allocation8], 0
          %s167 = sshll.u32 %s2, 4
          %s168 = int_to_ptr.hbm [resolvable:$true] %s167
          %s169 = sshll.u32 [#allocation9], 4
          %s170 = int_to_ptr.vmem [resolvable:$true] %s169
          %175 = dma.hbm_to_vmem [thread:$0]  %s168, 6144, %s170, [#allocation8], 128, 128, 8
        $region20: #{tpu_custom_call.1} parent=11 // pred_fallthru
          _
        // Predicated region
        $region21: #{tpu_custom_call.1} parent=11 // pred_check
          %p176 = pneg %p107
        $region22: #{tpu_custom_call.1} parent=11 // pred_check_branch
          %178 = sbr.rel (%p176) target = $region24
        $region23: #{tpu_custom_call.1} parent=11 // pred_region
          %180 = vsyncadd [#allocation11], 0
          %s182 = sshll.u32 %s3, 4
          %s183 = int_to_ptr.hbm [resolvable:$true] %s182
          %s184 = sshll.u32 [#allocation10], 4
          %s185 = int_to_ptr.vmem [resolvable:$true] %s184
          %187 = dma.hbm_to_vmem [thread:$0]  %s183, 64, %s185, [#allocation11]
        $region24: #{tpu_custom_call.1} parent=11 // pred_fallthru
          _
      $region12: #{tpu_custom_call.1} parent=5 // pred_fallthru
        _
      %p188 = scmp.lt.s32.totalorder %s18, 2
      // Predicated region
      $region25: #{tpu_custom_call.1} parent=5 // pred_check
        %p189 = pneg %p188
      $region26: #{tpu_custom_call.1} parent=5 // pred_check_branch
        %191 = sbr.rel (%p189) target = $region28
      $region27: #{tpu_custom_call.1} parent=5 // pred_region
        // Predicated region
        $region29: #{tpu_custom_call.1} parent=27 // pred_check
          %p192 = pneg %p38
        $region30: #{tpu_custom_call.1} parent=27 // pred_check_branch
          %194 = sbr.rel (%p192) target = $region32
        $region31: #{tpu_custom_call.1} parent=27 // pred_region
          %s195 = sand.u32 %s28, 1
          %s196 = scalar_lea.sflag [#allocation5], %s195
          %s197 = sand.u32 %s28, 1
          %s198 = smul.addr %s197, 16
          %s199 = scalar_lea.vmem [#allocation4], %s198
          %s200 = smul.u32 2, %s18
          %202 = vsyncadd %s196, 0
          %s203 = smul.addr %s200, 8
          %s204 = scalar_lea.hbm %s0, %s203
          %s205 = sshll.u32 %s204, 4
          %s206 = int_to_ptr.hbm [resolvable:$true] %s205
          %s207 = sshll.u32 %s199, 4
          %s208 = int_to_ptr.vmem [resolvable:$true] %s207
          %213 = dma.hbm_to_vmem [thread:$0]  %s206, 256, %s208, %s196, 128, 128, 8
        $region32: #{tpu_custom_call.1} parent=27 // pred_fallthru
          _
      $region28: #{tpu_custom_call.1} parent=5 // pred_fallthru
        _
      %p214 = scmp.le.s32.totalorder 1, %s18
      %p215 = scmp.lt.s32.totalorder %s18, 3
      %p216 = pnand %p214, %p215
      %p217 = pneg %p216
      // Predicated region
      $region33: #{tpu_custom_call.1} parent=5 // pred_check
        _
      $region34: #{tpu_custom_call.1} parent=5 // pred_check_branch
        %219 = sbr.rel (%p216) target = $region36
      $region35: #{tpu_custom_call.1} parent=5 // pred_region
        %s220 = ssub.s32 %s18, 1
        %s221 = sand.u32 %s31, 1
        %s222 = scalar_lea.sflag [#allocation5], %s221
        %s223 = sand.u32 %s31, 1
        %s224 = smul.addr %s223, 16
        %s225 = scalar_lea.vmem [#allocation4], %s224
        // Predicated region
        $region37: #{tpu_custom_call.1} parent=35 // pred_check
          %p226 = pneg %p44
        $region38: #{tpu_custom_call.1} parent=35 // pred_check_branch
          %228 = sbr.rel (%p226) target = $region40
        $region39: #{tpu_custom_call.1} parent=35 // pred_region
          %230 = dma.done %s222, 256
        $region40: #{tpu_custom_call.1} parent=35 // pred_fallthru
          _
        // Predicated region
        $region41: #{tpu_custom_call.1} parent=35 // pred_check
          %p231 = pneg %p65
        $region42: #{tpu_custom_call.1} parent=35 // pred_check_branch
          %233 = sbr.rel (%p231) target = $region44
        $region43: #{tpu_custom_call.1} parent=35 // pred_region
          %235 = dma.done [#allocation8], 6144
        $region44: #{tpu_custom_call.1} parent=35 // pred_fallthru
          _
        // Predicated region
        $region45: #{tpu_custom_call.1} parent=35 // pred_check
          %p236 = pneg %p86
        $region46: #{tpu_custom_call.1} parent=35 // pred_check_branch
          %238 = sbr.rel (%p236) target = $region48
        $region47: #{tpu_custom_call.1} parent=35 // pred_region
          %240 = dma.done [#allocation8], 6144
        $region48: #{tpu_custom_call.1} parent=35 // pred_fallthru
          _
        // Predicated region
        $region49: #{tpu_custom_call.1} parent=35 // pred_check
          %p241 = pneg %p107
        $region50: #{tpu_custom_call.1} parent=35 // pred_check_branch
          %243 = sbr.rel (%p241) target = $region52
        $region51: #{tpu_custom_call.1} parent=35 // pred_region
          %245 = dma.done [#allocation11], 64
        $region52: #{tpu_custom_call.1} parent=35 // pred_fallthru
          _
        %s246 = sand.u32 %s31, 1
        %s247 = scalar_lea.sflag [#allocation5], %s246
        %s248 = sand.u32 %s31, 1
        %s249 = smul.addr %s248, 16
        %s250 = scalar_lea.vmem [#allocation4], %s249
        %p251 = pneg %p44
        %p252 = pneg %p41
        %p253 = pneg %p65
        %p254 = pneg %p62
        %p255 = pneg %p86
        %p256 = pneg %p83
        %p257 = pneg %p107
        %p258 = pneg %p104
        %p259 = pneg %p133
        %p260 = pneg %p130
        %s261 = sand.u32 %s120, 1
        %s262 = scalar_lea.sflag [#allocation6], %s261
        %s263 = sand.u32 %s120, 1
        %s264 = smul.addr %s263, 16
        %s265 = scalar_lea.vmem [#allocation12], %s264
        %s266 = smul.u32 2, %s23
        %s267 = smul.u32 2, %s23
        %v268 = vld [vmem:[%s225] sm:$0xff]
        %v269 = vld [vmem:[%s225 + $0x8] sm:$0xff]
        %270 = vst [vmem:[#allocation2 + $0x8] sm:$0xff] %v268
        %271 = vst [vmem:[#allocation2 + $0x20] sm:$0xff] %v269
        %vm274 = vcmask 1040384
        %v275 = vrot.slane %v268, 7
        %v276 = vrot.slane %v269, 7
        %v277 = vsel %vm274, %v275, %v276
        %280 = vst [vmem:[#allocation2] sm:$0xfe] %v275
        %281 = vst [vmem:[#allocation2 + $0x18] sm:$0xff] %v277
        %vm282 = vcmask 1046528
        %v283 = vrot.slane %v268, 1
        %v284 = vrot.slane %v269, 1
        %v285 = vsel %vm282, %v283, %v284
        %288 = vst [vmem:[#allocation2 + $0x10] sm:$0xff] %v285
        %289 = vst [vmem:[#allocation2 + $0x28] sm:$0x7f] %v284
        %290 = vst [vmem:[#allocation2] sm:$0x1] 0.0
        %291 = vst [vmem:[#allocation2 + $0x2f] sm:$0x1] 0.0
        %v292 = vld [vmem:[#allocation2] sm:$0xff]
        %v293 = vld [vmem:[#allocation2 + $0x8] sm:$0xff]
        %v294 = vld [vmem:[#allocation2 + $0x10] sm:$0xff]
        %v295 = vld [vmem:[#allocation2 + $0x18] sm:$0xff]
        %v296 = vld [vmem:[#allocation2 + $0x20] sm:$0xff]
        %v297 = vld [vmem:[#allocation2 + $0x28] sm:$0xff]
        %v298 = vld [vmem:[#allocation7] sm:$0xff]
        %v299 = vld [vmem:[#allocation7 + $0x8] sm:$0xff]
        %v300 = vld [vmem:[#allocation7 + $0x10] sm:$0xff]
        %v301 = vld [vmem:[#allocation7 + $0x18] sm:$0xff]
        %v302 = vld [vmem:[#allocation7 + $0x20] sm:$0xff]
        %v303 = vld [vmem:[#allocation7 + $0x28] sm:$0xff]
        %v304 = vld [vmem:[#allocation7 + $0x30] sm:$0xff]
        %v305 = vld [vmem:[#allocation7 + $0x38] sm:$0xff]
        %v306 = vld [vmem:[#allocation7 + $0x40] sm:$0xff]
        %v307 = vld [vmem:[#allocation7 + $0x48] sm:$0xff]
        %v308 = vld [vmem:[#allocation7 + $0x50] sm:$0xff]
        %v309 = vld [vmem:[#allocation7 + $0x58] sm:$0xff]
        %v310 = vld [vmem:[#allocation7 + $0x60] sm:$0xff]
        %v311 = vld [vmem:[#allocation7 + $0x68] sm:$0xff]
        %v312 = vld [vmem:[#allocation7 + $0x70] sm:$0xff]
        %v313 = vld [vmem:[#allocation7 + $0x78] sm:$0xff]
        %v314 = vld [vmem:[#allocation7 + $0x80] sm:$0xff]
        %v315 = vld [vmem:[#allocation7 + $0x88] sm:$0xff]
        %v316 = vld [vmem:[#allocation7 + $0x90] sm:$0xff]
        %v317 = vld [vmem:[#allocation7 + $0x98] sm:$0xff]
        %v318 = vld [vmem:[#allocation7 + $0xa0] sm:$0xff]
        %v319 = vld [vmem:[#allocation7 + $0xa8] sm:$0xff]
        %v320 = vld [vmem:[#allocation7 + $0xb0] sm:$0xff]
        %v321 = vld [vmem:[#allocation7 + $0xb8] sm:$0xff]
        %v322 = vld [vmem:[#allocation7 + $0xc0] sm:$0xff]
        %v323 = vld [vmem:[#allocation7 + $0xc8] sm:$0xff]
        %v324 = vld [vmem:[#allocation7 + $0xd0] sm:$0xff]
        %v325 = vld [vmem:[#allocation7 + $0xd8] sm:$0xff]
        %v326 = vld [vmem:[#allocation7 + $0xe0] sm:$0xff]
        %v327 = vld [vmem:[#allocation7 + $0xe8] sm:$0xff]
        %v328 = vld [vmem:[#allocation7 + $0xf0] sm:$0xff]
        %v329 = vld [vmem:[#allocation7 + $0xf8] sm:$0xff]
        %v330 = vld [vmem:[#allocation7 + $0x100] sm:$0xff]
        %v331 = vld [vmem:[#allocation7 + $0x108] sm:$0xff]
        %v332 = vld [vmem:[#allocation7 + $0x110] sm:$0xff]
        %v333 = vld [vmem:[#allocation7 + $0x118] sm:$0xff]
        %v334 = vld [vmem:[#allocation7 + $0x120] sm:$0xff]
        %v335 = vld [vmem:[#allocation7 + $0x128] sm:$0xff]
        %v336 = vld [vmem:[#allocation7 + $0x130] sm:$0xff]
        %v337 = vld [vmem:[#allocation7 + $0x138] sm:$0xff]
        %v338 = vld [vmem:[#allocation7 + $0x140] sm:$0xff]
        %v339 = vld [vmem:[#allocation7 + $0x148] sm:$0xff]
        %v340 = vld [vmem:[#allocation7 + $0x150] sm:$0xff]
        %v341 = vld [vmem:[#allocation7 + $0x158] sm:$0xff]
        %v342 = vld [vmem:[#allocation7 + $0x160] sm:$0xff]
        %v343 = vld [vmem:[#allocation7 + $0x168] sm:$0xff]
        %v344 = vld [vmem:[#allocation7 + $0x170] sm:$0xff]
        %v345 = vld [vmem:[#allocation7 + $0x178] sm:$0xff]
        %346 = vmatpush.msra.mxu0 %v313
        %347 = vmatpush.msra.mxu0 %v312
        %348 = vmatpush.msra.mxu0 %v311
        %349 = vmatpush.msra.mxu0 %v310
        %350 = vmatpush.msra.mxu0 %v309
        %351 = vmatpush.msra.mxu0 %v308
        %352 = vmatpush.msra.mxu0 %v307
        %353 = vmatpush.msra.mxu0 %v306
        %354 = vmatpush.msra.mxu0 %v305
        %355 = vmatpush.msra.mxu0 %v304
        %356 = vmatpush.msra.mxu0 %v303
        %357 = vmatpush.msra.mxu0 %v302
        %358 = vmatpush.msra.mxu0 %v301
        %359 = vmatpush.msra.mxu0 %v300
        %360 = vmatpush.msra.mxu0 %v299
        %361 = vmatpush.msra.mxu0 %v298
        %362 = vmatmul.f32.gmra.mxu0 %v292
        %v363 = vpop.f32.mrf.mxu0
        %v364 = vadd.f32 0.0, %v363
        %365 = vmatmul.f32.gmra.mxu0 %v295
        %v366 = vpop.f32.mrf.mxu0
        %v367 = vadd.f32 0.0, %v366
        %368 = vdwg.mxu0
        %369 = vmatpush.msra.mxu0 %v329
        %370 = vmatpush.msra.mxu0 %v328
        %371 = vmatpush.msra.mxu0 %v327
        %372 = vmatpush.msra.mxu0 %v326
        %373 = vmatpush.msra.mxu0 %v325
        %374 = vmatpush.msra.mxu0 %v324
        %375 = vmatpush.msra.mxu0 %v323
        %376 = vmatpush.msra.mxu0 %v322
        %377 = vmatpush.msra.mxu0 %v321
        %378 = vmatpush.msra.mxu0 %v320
        %379 = vmatpush.msra.mxu0 %v319
        %380 = vmatpush.msra.mxu0 %v318
        %381 = vmatpush.msra.mxu0 %v317
        %382 = vmatpush.msra.mxu0 %v316
        %383 = vmatpush.msra.mxu0 %v315
        %384 = vmatpush.msra.mxu0 %v314
        %385 = vmatmul.f32.gmra.mxu0 %v293
        %v386 = vpop.f32.mrf.mxu0
        %v387 = vadd.f32 %v364, %v386
        %388 = vmatmul.f32.gmra.mxu0 %v296
        %v389 = vpop.f32.mrf.mxu0
        %v390 = vadd.f32 %v367, %v389
        %391 = vdwg.mxu0
        %392 = vmatpush.msra.mxu0 %v345
        %393 = vmatpush.msra.mxu0 %v344
        %394 = vmatpush.msra.mxu0 %v343
        %395 = vmatpush.msra.mxu0 %v342
        %396 = vmatpush.msra.mxu0 %v341
        %397 = vmatpush.msra.mxu0 %v340
        %398 = vmatpush.msra.mxu0 %v339
        %399 = vmatpush.msra.mxu0 %v338
        %400 = vmatpush.msra.mxu0 %v337
        %401 = vmatpush.msra.mxu0 %v336
        %402 = vmatpush.msra.mxu0 %v335
        %403 = vmatpush.msra.mxu0 %v334
        %404 = vmatpush.msra.mxu0 %v333
        %405 = vmatpush.msra.mxu0 %v332
        %406 = vmatpush.msra.mxu0 %v331
        %407 = vmatpush.msra.mxu0 %v330
        %408 = vmatmul.f32.gmra.mxu0 %v294
        %v409 = vpop.f32.mrf.mxu0
        %v410 = vadd.f32 %v387, %v409
        %411 = vmatmul.f32.gmra.mxu0 %v297
        %v412 = vpop.f32.mrf.mxu0
        %v413 = vadd.f32 %v390, %v412
        %414 = vdwg.mxu0
        %v415 = vld [vmem:[#allocation10] sm:$0x1]
        %v416 = vperm.slane %v415, 0
        %v417 = vmul.f32 %v410, %v416
        %v418 = vmul.f32 %v413, %v416
        %v419 = vld [vmem:[#allocation10 + $0x1] sm:$0x1]
        %v420 = vperm.slane %v419, 0
        %v421 = vadd.f32 %v417, %v420
        %v422 = vadd.f32 %v418, %v420
        %423 = vst [vmem:[#allocation3 + $0x8] sm:$0xff] %v421
        %424 = vst [vmem:[#allocation3 + $0x20] sm:$0xff] %v422
        %v427 = vrot.slane %v421, 7
        %v428 = vrot.slane %v422, 7
        %v429 = vsel %vm274, %v427, %v428
        %432 = vst [vmem:[#allocation3] sm:$0xfe] %v427
        %433 = vst [vmem:[#allocation3 + $0x18] sm:$0xff] %v429
        %v434 = vrot.slane %v421, 1
        %v435 = vrot.slane %v422, 1
        %v436 = vsel %vm282, %v434, %v435
        %439 = vst [vmem:[#allocation3 + $0x10] sm:$0xff] %v436
        %440 = vst [vmem:[#allocation3 + $0x28] sm:$0x7f] %v435
        %441 = vst [vmem:[#allocation3] sm:$0x1] 0.0
        %442 = vst [vmem:[#allocation3 + $0x2f] sm:$0x1] 0.0
        %v443 = vld [vmem:[#allocation3] sm:$0xff]
        %v444 = vld [vmem:[#allocation3 + $0x8] sm:$0xff]
        %v445 = vld [vmem:[#allocation3 + $0x10] sm:$0xff]
        %v446 = vld [vmem:[#allocation3 + $0x18] sm:$0xff]
        %v447 = vld [vmem:[#allocation3 + $0x20] sm:$0xff]
        %v448 = vld [vmem:[#allocation3 + $0x28] sm:$0xff]
        %v449 = vld [vmem:[#allocation9] sm:$0xff]
        %v450 = vld [vmem:[#allocation9 + $0x8] sm:$0xff]
        %v451 = vld [vmem:[#allocation9 + $0x10] sm:$0xff]
        %v452 = vld [vmem:[#allocation9 + $0x18] sm:$0xff]
        %v453 = vld [vmem:[#allocation9 + $0x20] sm:$0xff]
        %v454 = vld [vmem:[#allocation9 + $0x28] sm:$0xff]
        %v455 = vld [vmem:[#allocation9 + $0x30] sm:$0xff]
        %v456 = vld [vmem:[#allocation9 + $0x38] sm:$0xff]
        %v457 = vld [vmem:[#allocation9 + $0x40] sm:$0xff]
        %v458 = vld [vmem:[#allocation9 + $0x48] sm:$0xff]
        %v459 = vld [vmem:[#allocation9 + $0x50] sm:$0xff]
        %v460 = vld [vmem:[#allocation9 + $0x58] sm:$0xff]
        %v461 = vld [vmem:[#allocation9 + $0x60] sm:$0xff]
        %v462 = vld [vmem:[#allocation9 + $0x68] sm:$0xff]
        %v463 = vld [vmem:[#allocation9 + $0x70] sm:$0xff]
        %v464 = vld [vmem:[#allocation9 + $0x78] sm:$0xff]
        %v465 = vld [vmem:[#allocation9 + $0x80] sm:$0xff]
        %v466 = vld [vmem:[#allocation9 + $0x88] sm:$0xff]
        %v467 = vld [vmem:[#allocation9 + $0x90] sm:$0xff]
        %v468 = vld [vmem:[#allocation9 + $0x98] sm:$0xff]
        %v469 = vld [vmem:[#allocation9 + $0xa0] sm:$0xff]
        %v470 = vld [vmem:[#allocation9 + $0xa8] sm:$0xff]
        %v471 = vld [vmem:[#allocation9 + $0xb0] sm:$0xff]
        %v472 = vld [vmem:[#allocation9 + $0xb8] sm:$0xff]
        %v473 = vld [vmem:[#allocation9 + $0xc0] sm:$0xff]
        %v474 = vld [vmem:[#allocation9 + $0xc8] sm:$0xff]
        %v475 = vld [vmem:[#allocation9 + $0xd0] sm:$0xff]
        %v476 = vld [vmem:[#allocation9 + $0xd8] sm:$0xff]
        %v477 = vld [vmem:[#allocation9 + $0xe0] sm:$0xff]
        %v478 = vld [vmem:[#allocation9 + $0xe8] sm:$0xff]
        %v479 = vld [vmem:[#allocation9 + $0xf0] sm:$0xff]
        %v480 = vld [vmem:[#allocation9 + $0xf8] sm:$0xff]
        %v481 = vld [vmem:[#allocation9 + $0x100] sm:$0xff]
        %v482 = vld [vmem:[#allocation9 + $0x108] sm:$0xff]
        %v483 = vld [vmem:[#allocation9 + $0x110] sm:$0xff]
        %v484 = vld [vmem:[#allocation9 + $0x118] sm:$0xff]
        %v485 = vld [vmem:[#allocation9 + $0x120] sm:$0xff]
        %v486 = vld [vmem:[#allocation9 + $0x128] sm:$0xff]
        %v487 = vld [vmem:[#allocation9 + $0x130] sm:$0xff]
        %v488 = vld [vmem:[#allocation9 + $0x138] sm:$0xff]
        %v489 = vld [vmem:[#allocation9 + $0x140] sm:$0xff]
        %v490 = vld [vmem:[#allocation9 + $0x148] sm:$0xff]
        %v491 = vld [vmem:[#allocation9 + $0x150] sm:$0xff]
        %v492 = vld [vmem:[#allocation9 + $0x158] sm:$0xff]
        %v493 = vld [vmem:[#allocation9 + $0x160] sm:$0xff]
        %v494 = vld [vmem:[#allocation9 + $0x168] sm:$0xff]
        %v495 = vld [vmem:[#allocation9 + $0x170] sm:$0xff]
        %v496 = vld [vmem:[#allocation9 + $0x178] sm:$0xff]
        %497 = vmatpush.msra.mxu0 %v464
        %498 = vmatpush.msra.mxu0 %v463
        %499 = vmatpush.msra.mxu0 %v462
        %500 = vmatpush.msra.mxu0 %v461
        %501 = vmatpush.msra.mxu0 %v460
        %502 = vmatpush.msra.mxu0 %v459
        %503 = vmatpush.msra.mxu0 %v458
        %504 = vmatpush.msra.mxu0 %v457
        %505 = vmatpush.msra.mxu0 %v456
        %506 = vmatpush.msra.mxu0 %v455
        %507 = vmatpush.msra.mxu0 %v454
        %508 = vmatpush.msra.mxu0 %v453
        %509 = vmatpush.msra.mxu0 %v452
        %510 = vmatpush.msra.mxu0 %v451
        %511 = vmatpush.msra.mxu0 %v450
        %512 = vmatpush.msra.mxu0 %v449
        %513 = vmatmul.f32.gmra.mxu0 %v443
        %v514 = vpop.f32.mrf.mxu0
        %v515 = vadd.f32 0.0, %v514
        %516 = vmatmul.f32.gmra.mxu0 %v446
        %v517 = vpop.f32.mrf.mxu0
        %v518 = vadd.f32 0.0, %v517
        %519 = vdwg.mxu0
        %520 = vmatpush.msra.mxu0 %v480
        %521 = vmatpush.msra.mxu0 %v479
        %522 = vmatpush.msra.mxu0 %v478
        %523 = vmatpush.msra.mxu0 %v477
        %524 = vmatpush.msra.mxu0 %v476
        %525 = vmatpush.msra.mxu0 %v475
        %526 = vmatpush.msra.mxu0 %v474
        %527 = vmatpush.msra.mxu0 %v473
        %528 = vmatpush.msra.mxu0 %v472
        %529 = vmatpush.msra.mxu0 %v471
        %530 = vmatpush.msra.mxu0 %v470
        %531 = vmatpush.msra.mxu0 %v469
        %532 = vmatpush.msra.mxu0 %v468
        %533 = vmatpush.msra.mxu0 %v467
        %534 = vmatpush.msra.mxu0 %v466
        %535 = vmatpush.msra.mxu0 %v465
        %536 = vmatmul.f32.gmra.mxu0 %v444
        %v537 = vpop.f32.mrf.mxu0
        %v538 = vadd.f32 %v515, %v537
        %539 = vmatmul.f32.gmra.mxu0 %v447
        %v540 = vpop.f32.mrf.mxu0
        %v541 = vadd.f32 %v518, %v540
        %542 = vdwg.mxu0
        %543 = vmatpush.msra.mxu0 %v496
        %544 = vmatpush.msra.mxu0 %v495
        %545 = vmatpush.msra.mxu0 %v494
        %546 = vmatpush.msra.mxu0 %v493
        %547 = vmatpush.msra.mxu0 %v492
        %548 = vmatpush.msra.mxu0 %v491
        %549 = vmatpush.msra.mxu0 %v490
        %550 = vmatpush.msra.mxu0 %v489
        %551 = vmatpush.msra.mxu0 %v488
        %552 = vmatpush.msra.mxu0 %v487
        %553 = vmatpush.msra.mxu0 %v486
        %554 = vmatpush.msra.mxu0 %v485
        %555 = vmatpush.msra.mxu0 %v484
        %556 = vmatpush.msra.mxu0 %v483
        %557 = vmatpush.msra.mxu0 %v482
        %558 = vmatpush.msra.mxu0 %v481
        %559 = vmatmul.f32.gmra.mxu0 %v445
        %v560 = vpop.f32.mrf.mxu0
        %v561 = vadd.f32 %v538, %v560
        %562 = vmatmul.f32.gmra.mxu0 %v448
        %v563 = vpop.f32.mrf.mxu0
        %v564 = vadd.f32 %v541, %v563
        %565 = vdwg.mxu0
        %v566 = vld [vmem:[#allocation10 + $0x2] sm:$0x1]
        %v567 = vperm.slane %v566, 0
        %v568 = vmul.f32 %v561, %v567
        %v569 = vmul.f32 %v564, %v567
        %v570 = vld [vmem:[#allocation10 + $0x3] sm:$0x1]
        %v571 = vperm.slane %v570, 0
        %v572 = vadd.f32 %v568, %v571
        %v573 = vadd.f32 %v569, %v571
        %vm574 = vcmp.gt.f32.partialorder %v572, 0.0
        %vm575 = vcmp.gt.f32.partialorder %v573, 0.0
        %v576 = vmul.f32 %v572, 0.01
        %v577 = vmul.f32 %v573, 0.01
        %v578 = vsel %vm574, %v572, %v576
        %v579 = vsel %vm575, %v573, %v577
        %580 = vst [vmem:[%s265] sm:$0xff] %v578
        %581 = vst [vmem:[%s265 + $0x8] sm:$0xff] %v579
        %s582 = sand.u32 %s120, 1
        %s583 = scalar_lea.sflag [#allocation6], %s582
        %s584 = sand.u32 %s120, 1
        %s585 = smul.addr %s584, 16
        %s586 = scalar_lea.vmem [#allocation12], %s585
        // Predicated region
        $region53: #{tpu_custom_call.1} parent=35 // pred_check
          %p587 = pneg %p130
        $region54: #{tpu_custom_call.1} parent=35 // pred_check_branch
          %589 = sbr.rel (%p587) target = $region56
        $region55: #{tpu_custom_call.1} parent=35 // pred_region
          %s590 = smul.u32 2, %s23
          %592 = vsyncadd %s583, 0
          %s593 = smul.addr %s590, 8
          %s594 = scalar_lea.hbm %s4, %s593
          %s595 = sshll.u32 %s586, 4
          %s596 = int_to_ptr.vmem [resolvable:$true] %s595
          %s597 = sshll.u32 %s594, 4
          %s598 = int_to_ptr.hbm [resolvable:$true] %s597
          %603 = dma.vmem_to_hbm [thread:$0]  %s596, 256, %s598, %s583, 128, 128, 8
        $region56: #{tpu_custom_call.1} parent=35 // pred_fallthru
          _
      $region36: #{tpu_custom_call.1} parent=5 // pred_fallthru
        _
      %p604 = scmp.le.s32.totalorder 2, %s18
      // Predicated region
      $region57: #{tpu_custom_call.1} parent=5 // pred_check
        %p605 = pneg %p604
      $region58: #{tpu_custom_call.1} parent=5 // pred_check_branch
        %607 = sbr.rel (%p605) target = $region60
      $region59: #{tpu_custom_call.1} parent=5 // pred_region
        %s608 = ssub.s32 %s18, 2
        // Predicated region
        $region61: #{tpu_custom_call.1} parent=59 // pred_check
          %p609 = pneg %p136
        $region62: #{tpu_custom_call.1} parent=59 // pred_check_branch
          %611 = sbr.rel (%p609) target = $region64
        $region63: #{tpu_custom_call.1} parent=59 // pred_region
          %s612 = sand.u32 %s121, 1
          %s613 = scalar_lea.sflag [#allocation6], %s612
          %s614 = sand.u32 %s121, 1
          %s615 = smul.addr %s614, 16
          %s616 = scalar_lea.vmem [#allocation12], %s615
          %618 = dma.done %s613, 256
        $region64: #{tpu_custom_call.1} parent=59 // pred_fallthru
          _
      $region60: #{tpu_custom_call.1} parent=5 // pred_fallthru
        _
    $region6: #{tpu_custom_call.1} parent=1 // loop_footer
      %s22 = sadd.s32 1, %s18
    $region7: #{tpu_custom_call.1} parent=1 // loop_footer_branch
      %17 = sbr.rel target = $region3
    $region8: #{tpu_custom_call.1} parent=1 // loop_exit
      _
    %619 = vsyncpa [#allocation5], 1
    %s620 = scalar_lea.sflag [#allocation5], 1
    %621 = vsyncpa %s620, 1
    %622 = vsyncpa [#allocation8], 1
    %623 = vsyncpa [#allocation11], 1
    %624 = vsyncpa [#allocation6], 1
    %s625 = scalar_lea.sflag [#allocation6], 1
    %626 = vsyncpa %s625, 1

</llo_original>
